<compile_context>
chip_gen: v6e
topology: v6e:2x2x1
jax: 0.10.0
libtpu: 0.0.40
codegen_flags: <defaults>
</compile_context>

<pallas_src>
import math
import functools

import numpy as np
import jax
import jax.numpy as jnp
from jax.experimental import pallas as pl
from jax.experimental.pallas import tpu as pltpu


def _build_pe_table(d_model: int, max_seq_len: int) -> np.ndarray:
    """Vectorized replica of the PyTorch __init__ double loop.

    NOTE: intentionally keeps the tutorial's quirky exponents
    (cos uses 2*(i+1)/d_model, both use the raw even index i), so values
    differ from the canonical sinusoidal encoding of the paper.
    """
    assert d_model % 2 == 0, "d_model must be even (as in the PyTorch module)"
    pos = np.arange(max_seq_len, dtype=np.float64)[:, None]          # (S, 1)
    i_even = np.arange(0, d_model, 2, dtype=np.float64)[None, :]     # (1, D/2)
    pe = np.zeros((max_seq_len, d_model), dtype=np.float64)
    pe[:, 0::2] = np.sin(pos / 10000.0 ** (2.0 * i_even / d_model))
    pe[:, 1::2] = np.cos(pos / 10000.0 ** (2.0 * (i_even + 1.0) / d_model))
    return pe.astype(np.float32)


def _pos_enc_kernel(x_ref, pe_ref, o_ref, *, scale):
    # x_ref / o_ref: (bb, TR, 128); pe_ref: (1, TR, 128) broadcast over bb.
    # f32 compute, store in x.dtype.  (Purely bandwidth-bound; VPU is idle.)
    x = x_ref[...].astype(jnp.float32)
    o_ref[...] = (x * scale + pe_ref[...]).astype(o_ref.dtype)


# 8192 rows x 128 lanes x 4 B = 4 MiB per f32 block buffer.  Double-buffered
# x/out/pe => ~24 MiB of VMEM: fits v5e/v6e (128 MiB) and v7x (64 MiB) with
# headroom, while DMAs are large enough that the ~0.35 us per-step overhead
# is <10% even at v7x's 3.2 TB/s HBM.
_MAX_BLOCK_ROWS = 8192
_LANES = 128


def positional_encoder(x: jax.Array, pe_full: jax.Array, d_model: int) -> jax.Array:
    """x: (B, S, D); pe_full: (max_seq_len, D) float32. Returns (B, S, D) in x.dtype."""
    B, S, D = x.shape
    assert D == d_model, f"last dim of x ({D}) must equal d_model ({d_model})"
    max_seq_len = pe_full.shape[0]
    assert S <= max_seq_len, f"seq_len {S} exceeds max_seq_len {max_seq_len}"

    scale = float(math.sqrt(d_model))

    # ---- Lane-dense flattening of the per-batch (S, D) plane. -------------
    n = S * D
    rows = pl.cdiv(n, _LANES)          # python ints -> python int
    n_pad = rows * _LANES

    xf = x.reshape(B, n)
    pef = pe_full[:S, :].astype(jnp.float32).reshape(1, n)
    if n_pad != n:
        # Zero-pad the ragged tail so the kernel always sees (rows, 128).
        xf = jnp.pad(xf, ((0, 0), (0, n_pad - n)))
        pef = jnp.pad(pef, ((0, 0), (0, n_pad - n)))

    x3 = xf.reshape(B, rows, _LANES)
    pe3 = pef.reshape(1, rows, _LANES)   # single copy, no batch duplication

    # ---- Tile sizing: large row tiles; span batch when the plane is small.
    if rows >= _MAX_BLOCK_ROWS:
        tr = _MAX_BLOCK_ROWS             # multiple of 8; partial last block is masked
        bb = 1
    else:
        tr = rows                        # full row extent (always a legal block dim)
        bb = max(1, min(B, _MAX_BLOCK_ROWS // max(rows, 1)))

    num_row_tiles = pl.cdiv(rows, tr)
    num_batch_tiles = pl.cdiv(B, bb)

    kernel = functools.partial(_pos_enc_kernel, scale=scale)

    out = pl.pallas_call(
        kernel,
        out_shape=jax.ShapeDtypeStruct((B, rows, _LANES), x.dtype),
        grid_spec=pltpu.PrefetchScalarGridSpec(
            num_scalar_prefetch=0,
            # Row-tile axis outer, batch inner: pe's block index is constant
            # across the inner axis, so it is fetched once per row tile and
            # stays resident in VMEM while the batch streams through.
            grid=(num_row_tiles, num_batch_tiles),
            in_specs=[
                pl.BlockSpec((bb, tr, _LANES), lambda t, b: (b, t, 0)),  # x
                pl.BlockSpec((1, tr, _LANES), lambda t, b: (0, t, 0)),   # pe (VMEM-resident over b)
            ],
            out_specs=pl.BlockSpec((bb, tr, _LANES), lambda t, b: (b, t, 0)),
        ),
        compiler_params=pltpu.CompilerParams(
            dimension_semantics=("parallel", "parallel"),
            vmem_limit_bytes=48 * 1024 * 1024,
        ),
    )(x3, pe3)

    out = out.reshape(B, n_pad)
    if n_pad != n:
        out = out[:, :n]
    return out.reshape(B, S, D)


if __name__ == "__main__":
    # Small shapes consistent with the module's forward: (batch, seq, d_model).
    d_model = 32
    max_seq_len = 16
    batch = 2
    seq_len = 8

    key = jax.random.PRNGKey(0)
    x = jax.random.normal(key, (batch, seq_len, d_model), dtype=jnp.float32)

    pe_full = jnp.asarray(_build_pe_table(d_model, max_seq_len))

    out = positional_encoder(x, pe_full, d_model)
    out = jax.block_until_ready(out)

    # Reference check (pure JAX/numpy) — same math as the PyTorch forward.
    ref = x * math.sqrt(d_model) + pe_full[:seq_len, :][None, :, :]
    np.testing.assert_allclose(np.asarray(out), np.asarray(ref), rtol=1e-6, atol=1e-6)

    print("KERNEL_OK")
</pallas_src>

<mosaic_0001>
module attributes {stable_mosaic.version = 11 : i64} {
  func.func @_pos_enc_kernel(%arg0: i32, %arg1: i32, %arg2: memref<2x2x128xf32, #tpu.memory_space<vmem>>, %arg3: memref<1x2x128xf32, #tpu.memory_space<vmem>>, %arg4: memref<2x2x128xf32, #tpu.memory_space<vmem>>) attributes {dimension_semantics = [#tpu.dimension_semantics<parallel>, #tpu.dimension_semantics<parallel>], iteration_bounds = array<i64: 1, 1>, scalar_prefetch = 0 : i64, scratch_operands = 0 : i64, tpu.core_type = #tpu.core_type<tc>, window_params = [{transform_indices = @transform_0, window_bounds = array<i64: 2, 2, 128>}, {transform_indices = @transform_1, window_bounds = array<i64: 1, 2, 128>}, {transform_indices = @transform_2, window_bounds = array<i64: 2, 2, 128>}]} {
    %c0 = arith.constant 0 : index
    %c0_0 = arith.constant 0 : index
    %c0_1 = arith.constant 0 : index
    %0 = vector.load %arg2[%c0, %c0_0, %c0_1] : memref<2x2x128xf32, #tpu.memory_space<vmem>>, vector<2x2x128xf32>
    %cst = arith.constant 5.65685415 : f32
    %1 = vector.broadcast %cst : f32 to vector<2x2x128xf32>
    %2 = arith.mulf %0, %1 : vector<2x2x128xf32>
    %c0_2 = arith.constant 0 : index
    %c0_3 = arith.constant 0 : index
    %c0_4 = arith.constant 0 : index
    %3 = vector.load %arg3[%c0_2, %c0_3, %c0_4] : memref<1x2x128xf32, #tpu.memory_space<vmem>>, vector<1x2x128xf32>
    %4 = vector.broadcast %3 : vector<1x2x128xf32> to vector<2x2x128xf32>
    %5 = arith.addf %2, %4 : vector<2x2x128xf32>
    %c0_5 = arith.constant 0 : index
    %c0_6 = arith.constant 0 : index
    %c0_7 = arith.constant 0 : index
    %6 = vector.load %arg4[%c0_5, %c0_6, %c0_7] : memref<2x2x128xf32, #tpu.memory_space<vmem>>, vector<2x2x128xf32>
    tpu.vector_store %arg4[%c0_5, %c0_6, %c0_7], %5 {strides = array<i32>} : memref<2x2x128xf32, #tpu.memory_space<vmem>>, vector<2x2x128xf32>,
    return
  }
  func.func @transform_0(%arg0: i32, %arg1: i32) -> (i32, i32, i32) {
    %c0_i32 = arith.constant 0 : i32
    %c0_i32_0 = arith.constant 0 : i32
    return %arg1, %arg0, %c0_i32 : i32, i32, i32
  }
  func.func @transform_1(%arg0: i32, %arg1: i32) -> (i32, i32, i32) {
    %c0_i32 = arith.constant 0 : i32
    %c0_i32_0 = arith.constant 0 : i32
    %c0_i32_1 = arith.constant 0 : i32
    return %c0_i32, %arg0, %c0_i32_0 : i32, i32, i32
  }
  func.func @transform_2(%arg0: i32, %arg1: i32) -> (i32, i32, i32) {
    %c0_i32 = arith.constant 0 : i32
    %c0_i32_0 = arith.constant 0 : i32
    return %arg1, %arg0, %c0_i32 : i32, i32, i32
  }
}

</mosaic_0001>

<llo_original>
// kernel: tpu_custom_call.1
$region0: #{tpu_custom_call.1}
  #allocation0 [shape = 'u32[]', space=smem, size = 0x4, offset = 0x4, fixed_abs, tag = 'smem constant byte address 0x4 - core index']
  #allocation1 [shape = 'u32[144,128]{1,0:T(1,128)}', space=vmem, size = 0x12000, scoped, tag = 'internal scratch']
  %s0 = inlined_call_operand.hbm [shape: f32[2,2,128], index: 0, kind: input, shape index: {}]
  %s1 = inlined_call_operand.hbm [shape: f32[1,2,128], index: 1, kind: input, shape index: {}]
  %s2 = inlined_call_operand.hbm [shape: f32[2,2,128], index: 2, kind: output, shape index: {}]
  %s3 = sld [smem:[#allocation0]]
  $region26: #{tpu_custom_call.1} parent=0
    _
  %s5 = ssub.s32 1, %s3
  %s6 = scalar_select 0, %s5, %s3
  $region1: #{tpu_custom_call.1} parent=0
    #allocation2 [shape = 'u8[2048]{0}', space=vmem, size = 0x800, scoped, tag = 'input window, operand 0, single buffered']
    #allocation3 [shape = 's32[1]{0}', space=sflag, size = 0x4, scoped, tag = 'scoped memory for tpu_custom_call.1']
    #allocation4 [shape = 's32[1]{0}', space=sflag, size = 0x4, scoped, tag = 'scoped memory for tpu_custom_call.1']
    #allocation5 [shape = 'u8[1024]{0}', space=vmem, size = 0x400, scoped, tag = 'input window, operand 1, single buffered']
    #allocation6 [shape = 's32[1]{0}', space=sflag, size = 0x4, scoped, tag = 'scoped memory for tpu_custom_call.1']
    #allocation7 [shape = 'u8[2048]{0}', space=vmem, size = 0x800, scoped, tag = 'output window, operand 0, single buffered']
    %7 = vsyncpa [#allocation3], 0
    %8 = vsyncpa [#allocation6], 0
    %9 = vsyncpa [#allocation4], 0
    // Predicated region
    $region2: #{tpu_custom_call.1} parent=1 // pred_check
      _
    $region3: #{tpu_custom_call.1} parent=1 // pred_check_branch
      %11 = sbr.rel (0) target = $region5
    $region4: #{tpu_custom_call.1} parent=1 // pred_region
      %s13 = ssub.s32 64, 64
      %14 = vsyncadd [#allocation3], %s13
      %s15 = sshll.u32 [#allocation2], 4
      %s16 = int_to_ptr.vmem [resolvable:$true] %s15
      %21 = dma.hbm_to_vmem [thread:$0]  %s0, 64, %s16, [#allocation3], 32, 32, 2
    $region5: #{tpu_custom_call.1} parent=1 // pred_fallthru
      _
    // Predicated region
    $region6: #{tpu_custom_call.1} parent=1 // pred_check
      _
    $region7: #{tpu_custom_call.1} parent=1 // pred_check_branch
      %23 = sbr.rel (0) target = $region9
    $region8: #{tpu_custom_call.1} parent=1 // pred_region
      %s25 = ssub.s32 32, 32
      %26 = vsyncadd [#allocation6], %s25
      %s28 = sshll.u32 [#allocation5], 4
      %s29 = int_to_ptr.vmem [resolvable:$true] %s28
      %31 = dma.hbm_to_vmem [thread:$0]  %s1, 32, %s29, [#allocation6]
    $region9: #{tpu_custom_call.1} parent=1 // pred_fallthru
      _
    // Predicated region
    $region10: #{tpu_custom_call.1} parent=1 // pred_check
      _
    $region11: #{tpu_custom_call.1} parent=1 // pred_check_branch
      %33 = sbr.rel (0) target = $region13
    $region12: #{tpu_custom_call.1} parent=1 // pred_region
      %34 = dma.done [#allocation3], 64
    $region13: #{tpu_custom_call.1} parent=1 // pred_fallthru
      _
    // Predicated region
    $region14: #{tpu_custom_call.1} parent=1 // pred_check
      _
    $region15: #{tpu_custom_call.1} parent=1 // pred_check_branch
      %36 = sbr.rel (0) target = $region17
    $region16: #{tpu_custom_call.1} parent=1 // pred_region
      %37 = dma.done [#allocation6], 32
    $region17: #{tpu_custom_call.1} parent=1 // pred_fallthru
      _
    %v38 = vld [vmem:[#allocation2] sm:$0x3]
    %v39 = vld [vmem:[#allocation2 + $0x2] sm:$0x3]
    %v40 = vmul.f32 %v38, 5.656854
    %v41 = vmul.f32 %v39, 5.656854
    %v42 = vld [vmem:[#allocation5] sm:$0x3]
    %v43 = vadd.f32 %v40, %v42
    %v44 = vadd.f32 %v41, %v42
    %45 = vst [vmem:[#allocation7] sm:$0x3] %v43
    %46 = vst [vmem:[#allocation7 + $0x2] sm:$0x3] %v44
    // Predicated region
    $region18: #{tpu_custom_call.1} parent=1 // pred_check
      _
    $region19: #{tpu_custom_call.1} parent=1 // pred_check_branch
      %48 = sbr.rel (0) target = $region21
    $region20: #{tpu_custom_call.1} parent=1 // pred_region
      %s50 = ssub.s32 64, 64
      %51 = vsyncadd [#allocation4], %s50
      %s52 = sshll.u32 [#allocation7], 4
      %s53 = int_to_ptr.vmem [resolvable:$true] %s52
      %58 = dma.vmem_to_hbm [thread:$0]  %s53, 64, %s2, [#allocation4], 32, 32, 2
    $region21: #{tpu_custom_call.1} parent=1 // pred_fallthru
      _
    // Predicated region
    $region22: #{tpu_custom_call.1} parent=1 // pred_check
      _
    $region23: #{tpu_custom_call.1} parent=1 // pred_check_branch
      %60 = sbr.rel (0) target = $region25
    $region24: #{tpu_custom_call.1} parent=1 // pred_region
      %61 = dma.done [#allocation4], 64
    $region25: #{tpu_custom_call.1} parent=1 // pred_fallthru
      _
    %62 = vsyncpa [#allocation3], 1
    %63 = vsyncpa [#allocation6], 1
    %64 = vsyncpa [#allocation4], 1

</llo_original>
